<compile_context>
chip_gen: v7x
topology: tpu7x:2x2x1
jax: 0.10.0
libtpu: 0.0.40
codegen_flags: <defaults>
</compile_context>

<pallas_src>
import functools

import jax
import jax.numpy as jnp
from jax.experimental import pallas as pl
from jax.experimental.pallas import tpu as pltpu


def _weighted_mse_kernel(w_ref, pred_ref, label_ref, out_ref, *, D, B, TR):
    """One row-tile of the weighted-MSE reduction.

    pred_ref / label_ref: (TR, T*D) lane-dense VMEM tiles.
    w_ref : (1,) f32 in SMEM (runtime weight).
    out_ref: (1,) f32 in SMEM, used directly as the running accumulator
             (resident across the whole grid since its block never changes).
    """
    i = pl.program_id(0)

    @pl.when(i == 0)
    def _init():
        out_ref[0] = jnp.float32(0.0)

    p = pred_ref[...].astype(jnp.float32)
    l = label_ref[...].astype(jnp.float32)
    se = (p - l) ** 2

    # Mask rows past B (only matters for a partial last tile; all-true otherwise).
    row = jax.lax.broadcasted_iota(jnp.int32, se.shape, 0) + i * TR
    se = jnp.where(row < B, se, jnp.float32(0.0))

    # Unweighted full reduction over this tile.
    total = jnp.sum(se)

    # Correction term: SE restricted to component 0 of the original last dim.
    # In the flattened (rows, T*D) layout those sit at lanes where lane % D == 0.
    lane = jax.lax.broadcasted_iota(jnp.int32, se.shape, 1)
    comp0 = jnp.sum(jnp.where(lane % D == 0, se, jnp.float32(0.0)))

    w = w_ref[0]
    # sum(weighted SE) = sum(SE) + (w - 1) * sum(SE @ component 0)
    out_ref[0] = out_ref[0] + total + (w - jnp.float32(1.0)) * comp0

    @pl.when(i == pl.num_programs(0) - 1)
    def _finalize():
        # Literal /12 from the reference implementation.
        out_ref[0] = out_ref[0] * jnp.float32(1.0 / 12.0)


def weighted_mse_loss(pred, label, weight, *, row_tile=512):
    """Pallas implementation of weighted_MSELoss.forward (returns scalar loss)."""
    assert pred.shape == label.shape and pred.ndim == 3
    B, T, D = pred.shape
    C = T * D

    # Free, contiguous reshape -> lane-dense 2-D slab; keep the storage dtype
    # (bf16 stays bf16 through the DMA and is widened in-register).
    p2 = pred.reshape(B, C)
    l2 = label.reshape(B, C)

    # Runtime scalar weight (SMEM operand) -> no recompile per distinct weight.
    w_arr = jnp.asarray(weight, dtype=jnp.float32).reshape(1)

    if B <= row_tile:
        tr = B                      # single tile == full array (no (8,128) issue)
        num_tiles = 1
    else:
        tr = row_tile               # multiple of 8 -> legal sublane tiling
        num_tiles = pl.cdiv(B, tr)  # last tile may be partial; kernel masks rows

    kernel = functools.partial(_weighted_mse_kernel, D=D, B=B, TR=tr)
    out = pl.pallas_call(
        kernel,
        out_shape=jax.ShapeDtypeStruct((1,), jnp.float32),
        grid=(num_tiles,),
        in_specs=[
            pl.BlockSpec(memory_space=pltpu.MemorySpace.SMEM),   # weight scalar
            pl.BlockSpec((tr, C), lambda i: (i, 0)),             # pred rows
            pl.BlockSpec((tr, C), lambda i: (i, 0)),             # label rows
        ],
        out_specs=pl.BlockSpec(memory_space=pltpu.MemorySpace.SMEM),
        compiler_params=pltpu.CompilerParams(
            dimension_semantics=("arbitrary",)),
    )(w_arr, p2, l2)
    return out[0]


class WeightedMSELossPallas:
    """Mirror of the PyTorch weighted_MSELoss module's interface."""

    def __init__(self, weight: float):
        self.weight = float(weight)

    def __call__(self, pred, batch):
        label = batch["label_waypoint"]
        return weighted_mse_loss(pred, label, self.weight)


def _reference(pred, label, weight):
    # Exact PyTorch reduction order: per-batch sum over dims [1,2], /12, then sum.
    se = (pred.astype(jnp.float32) - label.astype(jnp.float32)) ** 2
    se = se.at[:, :, 0].multiply(jnp.float32(weight))
    return jnp.sum(jnp.sum(se, axis=(1, 2)) / jnp.float32(12.0))


if __name__ == "__main__":
    key = jax.random.PRNGKey(0)
    k1, k2, k3, k4 = jax.random.split(key, 4)

    # Primary case: trajectory-like shapes (batch=2, 12 waypoints, (x, y) state).
    B, T, D = 2, 12, 2
    pred = jax.random.normal(k1, (B, T, D), dtype=jnp.float32)
    label = jax.random.normal(k2, (B, T, D), dtype=jnp.float32)
    batch = {"label_waypoint": label}

    loss_mod = WeightedMSELossPallas(weight=2.0)
    loss = loss_mod(pred, batch)
    jax.block_until_ready(loss)
    ref = _reference(pred, label, 2.0)
    assert jnp.allclose(loss, ref, rtol=1e-5, atol=1e-5), (loss, ref)

    # Also exercise the multi-tile (masked, non-divisible rows) reduction path.
    B2 = 20
    pred2 = jax.random.normal(k3, (B2, T, D), dtype=jnp.float32)
    label2 = jax.random.normal(k4, (B2, T, D), dtype=jnp.float32)
    loss2 = weighted_mse_loss(pred2, label2, 0.5, row_tile=8)
    jax.block_until_ready(loss2)
    ref2 = _reference(pred2, label2, 0.5)
    assert jnp.allclose(loss2, ref2, rtol=1e-5, atol=1e-5), (loss2, ref2)

    print("KERNEL_OK")
</pallas_src>

<mosaic_0001>
module attributes {stable_mosaic.version = 11 : i64} {
  func.func @_weighted_mse_kernel(%arg0: i32, %arg1: memref<1xf32, #tpu.memory_space<smem>>, %arg2: memref<2x24xf32, #tpu.memory_space<vmem>>, %arg3: memref<2x24xf32, #tpu.memory_space<vmem>>, %arg4: memref<1xf32, #tpu.memory_space<smem>>) attributes {dimension_semantics = [#tpu.dimension_semantics<arbitrary>], iteration_bounds = array<i64: 1>, scalar_prefetch = 0 : i64, scratch_operands = 0 : i64, tpu.core_type = #tpu.core_type<tc>, window_params = [{transform_indices = @transform_0, window_bounds = array<i64: 1>}, {transform_indices = @transform_1, window_bounds = array<i64: 2, 24>}, {transform_indices = @transform_2, window_bounds = array<i64: 2, 24>}, {transform_indices = @transform_3, window_bounds = array<i64: 1>}]} {
    %c0_i32 = arith.constant 0 : i32
    %0 = arith.cmpi eq, %arg0, %c0_i32 : i32
    %1 = arith.extui %0 : i1 to i32
    %c0_i32_0 = arith.constant 0 : i32
    %2 = arith.cmpi ne, %1, %c0_i32_0 : i32
    scf.if %2 {
      %cst_20 = arith.constant 0.000000e+00 : f32
      %c0_21 = arith.constant 0 : index
      %54 = memref.load %arg4[%c0_21] : memref<1xf32, #tpu.memory_space<smem>>
      memref.store %cst_20, %arg4[%c0_21] : memref<1xf32, #tpu.memory_space<smem>>
    } else {
    }
    %c0 = arith.constant 0 : index
    %c0_1 = arith.constant 0 : index
    %3 = vector.load %arg2[%c0, %c0_1] : memref<2x24xf32, #tpu.memory_space<vmem>>, vector<2x24xf32>
    %c0_2 = arith.constant 0 : index
    %c0_3 = arith.constant 0 : index
    %4 = vector.load %arg3[%c0_2, %c0_3] : memref<2x24xf32, #tpu.memory_space<vmem>>, vector<2x24xf32>
    %5 = arith.subf %3, %4 : vector<2x24xf32>
    %6 = arith.mulf %5, %5 : vector<2x24xf32>
    %7 = tpu.iota {dimensions = array<i32: 0>} : vector<2x24xi32>
    %c2_i32 = arith.constant 2 : i32
    %8 = arith.muli %arg0, %c2_i32 : i32
    %9 = vector.broadcast %8 : i32 to vector<2x24xi32>
    %10 = arith.addi %7, %9 : vector<2x24xi32>
    %c2_i32_4 = arith.constant 2 : i32
    %11 = vector.broadcast %c2_i32_4 : i32 to vector<2x24xi32>
    %12 = arith.cmpi slt, %10, %11 : vector<2x24xi32>
    %cst = arith.constant 0.000000e+00 : f32
    %13 = vector.broadcast %cst : f32 to vector<2x24xf32>
    %14 = arith.select %12, %6, %13 : vector<2x24xi1>, vector<2x24xf32>
    %15 = vector.shape_cast %14 : vector<2x24xf32> to vector<1x2x24xf32>
    %cst_5 = arith.constant dense<0.000000e+00> : vector<1xf32>
    %16 = vector.multi_reduction <add>, %15, %cst_5 [1, 2] : vector<1x2x24xf32> to vector<1xf32>
    %17 = vector.shape_cast %16 : vector<1xf32> to vector<1x1x1xf32>
    %18 = vector.extract %17[0, 0, 0] : f32 from vector<1x1x1xf32>
    %19 = tpu.iota {dimensions = array<i32: 1>} : vector<2x24xi32>
    %c2_i32_6 = arith.constant 2 : i32
    %c0_i32_7 = arith.constant 0 : i32
    %20 = arith.cmpi eq, %c2_i32_6, %c0_i32_7 : i32
    %c1_i32 = arith.constant 1 : i32
    %21 = arith.select %20, %c1_i32, %c2_i32_6 : i32
    %22 = vector.broadcast %21 : i32 to vector<2x24xi32>
    %23 = arith.remsi %19, %22 : vector<2x24xi32>
    %c0_i32_8 = arith.constant 0 : i32
    %24 = vector.broadcast %c0_i32_8 : i32 to vector<2x24xi32>
    %25 = arith.cmpi ne, %23, %24 : vector<2x24xi32>
    %c0_i32_9 = arith.constant 0 : i32
    %26 = vector.broadcast %c0_i32_9 : i32 to vector<2x24xi32>
    %27 = arith.cmpi slt, %23, %26 : vector<2x24xi32>
    %c0_i32_10 = arith.constant 0 : i32
    %28 = arith.cmpi slt, %21, %c0_i32_10 : i32
    %29 = vector.broadcast %28 : i1 to vector<2x24xi1>
    %30 = vector.broadcast %29 : vector<2x24xi1> to vector<2x24xi1>
    %31 = arith.xori %27, %30 : vector<2x24xi1>
    %32 = arith.andi %31, %25 : vector<2x24xi1>
    %33 = vector.broadcast %21 : i32 to vector<2x24xi32>
    %34 = arith.addi %23, %33 : vector<2x24xi32>
    %35 = arith.select %32, %34, %23 : vector<2x24xi1>, vector<2x24xi32>
    %c0_i32_11 = arith.constant 0 : i32
    %36 = vector.broadcast %c0_i32_11 : i32 to vector<2x24xi32>
    %37 = arith.cmpi eq, %35, %36 : vector<2x24xi32>
    %cst_12 = arith.constant 0.000000e+00 : f32
    %38 = vector.broadcast %cst_12 : f32 to vector<2x24xf32>
    %39 = arith.select %37, %14, %38 : vector<2x24xi1>, vector<2x24xf32>
    %40 = vector.shape_cast %39 : vector<2x24xf32> to vector<1x2x24xf32>
    %cst_13 = arith.constant dense<0.000000e+00> : vector<1xf32>
    %41 = vector.multi_reduction <add>, %40, %cst_13 [1, 2] : vector<1x2x24xf32> to vector<1xf32>
    %42 = vector.shape_cast %41 : vector<1xf32> to vector<1x1x1xf32>
    %43 = vector.extract %42[0, 0, 0] : f32 from vector<1x1x1xf32>
    %c0_14 = arith.constant 0 : index
    %44 = memref.load %arg1[%c0_14] : memref<1xf32, #tpu.memory_space<smem>>
    %c0_15 = arith.constant 0 : index
    %45 = memref.load %arg4[%c0_15] : memref<1xf32, #tpu.memory_space<smem>>
    %46 = arith.addf %45, %18 : f32
    %cst_16 = arith.constant 1.000000e+00 : f32
    %47 = arith.subf %44, %cst_16 : f32
    %48 = arith.mulf %47, %43 : f32
    %49 = arith.addf %46, %48 : f32
    %c0_17 = arith.constant 0 : index
    %50 = memref.load %arg4[%c0_17] : memref<1xf32, #tpu.memory_space<smem>>
    memref.store %49, %arg4[%c0_17] : memref<1xf32, #tpu.memory_space<smem>>
    %c0_i32_18 = arith.constant 0 : i32
    %51 = arith.cmpi eq, %arg0, %c0_i32_18 : i32
    %52 = arith.extui %51 : i1 to i32
    %c0_i32_19 = arith.constant 0 : i32
    %53 = arith.cmpi ne, %52, %c0_i32_19 : i32
    scf.if %53 {
      %c0_20 = arith.constant 0 : index
      %54 = memref.load %arg4[%c0_20] : memref<1xf32, #tpu.memory_space<smem>>
      %cst_21 = arith.constant 0.0833333358 : f32
      %55 = arith.mulf %54, %cst_21 : f32
      %c0_22 = arith.constant 0 : index
      %56 = memref.load %arg4[%c0_22] : memref<1xf32, #tpu.memory_space<smem>>
      memref.store %55, %arg4[%c0_22] : memref<1xf32, #tpu.memory_space<smem>>
    } else {
    }
    return
  }
  func.func @transform_0(%arg0: i32) -> i32 {
    %c0_i32 = arith.constant 0 : i32
    %c0_i32_0 = arith.constant 0 : i32
    return %c0_i32 : i32
  }
  func.func @transform_1(%arg0: i32) -> (i32, i32) {
    %c0_i32 = arith.constant 0 : i32
    %c0_i32_0 = arith.constant 0 : i32
    return %arg0, %c0_i32 : i32, i32
  }
  func.func @transform_2(%arg0: i32) -> (i32, i32) {
    %c0_i32 = arith.constant 0 : i32
    %c0_i32_0 = arith.constant 0 : i32
    return %arg0, %c0_i32 : i32, i32
  }
  func.func @transform_3(%arg0: i32) -> i32 {
    %c0_i32 = arith.constant 0 : i32
    %c0_i32_0 = arith.constant 0 : i32
    return %c0_i32 : i32
  }
}

</mosaic_0001>

<llo_original>
// kernel: tpu_custom_call.1
$region0: #{tpu_custom_call.1}
  #allocation0 [shape = 'u32[]', space=smem, size = 0x4, offset = 0x4, fixed_abs, tag = 'smem constant byte address 0x4 - core index']
  #allocation1 [shape = 'u32[144,128]{1,0:T(1,128)}', space=vmem, size = 0x12000, scoped, tag = 'internal scratch']
  #allocation2 [shape = 'f32[1]{0:T(128)S(6)}', space=smem, size = 0x200, scoped, tag = 'scoped memory for tpu_custom_call.1']
  %s0 = inlined_call_operand.<no memory space> [shape: f32[1], index: 0, kind: input, shape index: {}]
  %s1 = inlined_call_operand.vmem [shape: f32[2,24], index: 1, kind: input, shape index: {}]
  %s2 = inlined_call_operand.vmem [shape: f32[2,24], index: 2, kind: input, shape index: {}]
  %s3 = inlined_call_operand.hbm [shape: f32[1], index: 3, kind: output, shape index: {}]
  %s4 = sld [smem:[#allocation0]]
  $region30: #{tpu_custom_call.1} parent=0
    _
  %s6 = ssub.s32 1, %s4
  %s7 = scalar_select 0, %s6, %s4
  %8 = sst [smem:[#allocation2]] %s0
  $region1: #{tpu_custom_call.1} parent=0
    #allocation3 [shape = 'u8[512]{0}', space=smem, size = 0x200, scoped, tag = 'output window, operand 0, single buffered']
    #allocation4 [shape = 's32[1]{0}', space=sflag, size = 0x4, scoped, tag = 'scoped memory for tpu_custom_call.1']
    %9 = vsyncpa [#allocation4], 0
    // Predicated region
    $region2: #{tpu_custom_call.1} parent=1 // pred_check
      _
    $region3: #{tpu_custom_call.1} parent=1 // pred_check_branch
      %11 = sbr.rel (0) target = $region5
    $region4: #{tpu_custom_call.1} parent=1 // pred_region
      _
    $region5: #{tpu_custom_call.1} parent=1 // pred_fallthru
      _
    // Predicated region
    $region6: #{tpu_custom_call.1} parent=1 // pred_check
      _
    $region7: #{tpu_custom_call.1} parent=1 // pred_check_branch
      %13 = sbr.rel (0) target = $region9
    $region8: #{tpu_custom_call.1} parent=1 // pred_region
      _
    $region9: #{tpu_custom_call.1} parent=1 // pred_fallthru
      _
    // Predicated region
    $region10: #{tpu_custom_call.1} parent=1 // pred_check
      _
    $region11: #{tpu_custom_call.1} parent=1 // pred_check_branch
      %15 = sbr.rel (0) target = $region13
    $region12: #{tpu_custom_call.1} parent=1 // pred_region
      _
    $region13: #{tpu_custom_call.1} parent=1 // pred_fallthru
      _
    %p16 = scmp.eq.s32.totalorder 0, 0
    // Predicated region
    $region14: #{tpu_custom_call.1} parent=1 // pred_check
      %p17 = pneg %p16
    $region15: #{tpu_custom_call.1} parent=1 // pred_check_branch
      %19 = sbr.rel (%p17) target = $region17
    $region16: #{tpu_custom_call.1} parent=1 // pred_region
      %s20 = scalar_lea.smem [#allocation3], 0
      %21 = sst [smem:[%s20]] 0.0
    $region17: #{tpu_custom_call.1} parent=1 // pred_fallthru
      _
    %v22 = vld [vmem:[%s1] sm:$0x3]
    %v23 = vld [vmem:[%s2] sm:$0x3]
    %v24 = vsub.f32 %v22, %v23
    %v25 = vmul.f32 %v24, %v24
    %v26 = vlaneseq
    %v27 = vshrl.u32 %v26, 7
    %s28 = smul.u32 0, 2
    %v29 = vstv %s28
    %v30 = vadd.s32 %v27, %v29
    %vm31 = vcmp.lt.s32.totalorder %v30, 2
    %v32 = vsel %vm31, %v25, 0.0
    %vm33 = vcmask 189440
    %v34 = vsel %vm33, %v32, 0.0
    %35 = vadd.xlane.f32.xlu0 %v34
    %v36 = vpop.xlane.xlu0 %35
    %v37 = vrot.slane %v36, 4
    %v38 = vadd.f32 %v36, %v37
    %v39 = vrot.slane %v38, 2
    %v40 = vadd.f32 %v38, %v39
    %v41 = vrot.slane %v40, 1
    %v42 = vadd.f32 %v40, %v41
    %s43 = vtos %v42
    %v44 = vlaneseq
    %v45 = vand.u32 %v44, 127
    %vm46 = vcmp.lt.s32.totalorder %v45, 0
    %v47 = vsub.s32 0, %v45
    %v48 = vsel %vm46, %v47, %v45
    %v49 = vshrl.u32 %v48, 1
    %v50 = vand.u32 %v48, 1
    %v51 = vsub.s32 0, %v50
    %v52 = vsel %vm46, %v51, %v50
    %vm53 = vcmp.ne.s32.totalorder %v52, 0
    %vm54 = vcmp.lt.s32.totalorder %v52, 0
    %vm55 = vmand %vm54, %vm53
    %v56 = vadd.s32 %v52, 2
    %v57 = vsel %vm55, %v56, %v52
    %vm58 = vcmp.eq.s32.totalorder %v57, 0
    %v59 = vsel %vm58, %v32, 0.0
    %v60 = vsel %vm33, %v59, 0.0
    %61 = vadd.xlane.f32.xlu0 %v60
    %v62 = vpop.xlane.xlu0 %61
    %v63 = vrot.slane %v62, 4
    %v64 = vadd.f32 %v62, %v63
    %v65 = vrot.slane %v64, 2
    %v66 = vadd.f32 %v64, %v65
    %v67 = vrot.slane %v66, 1
    %v68 = vadd.f32 %v66, %v67
    %s69 = vtos %v68
    %s70 = sld [smem:[#allocation2]]
    %s71 = sld [smem:[#allocation3]]
    %s72 = sadd.f32 %s71, %s43
    %s73 = ssub.f32 %s70, 1.0
    %s74 = smul.f32 %s73, %s69
    %s75 = sadd.f32 %s72, %s74
    %s76 = scalar_lea.smem [#allocation3], 0
    %77 = sst [smem:[%s76]] %s75
    // Predicated region
    $region18: #{tpu_custom_call.1} parent=1 // pred_check
      %p78 = pneg %p16
    $region19: #{tpu_custom_call.1} parent=1 // pred_check_branch
      %80 = sbr.rel (%p78) target = $region21
    $region20: #{tpu_custom_call.1} parent=1 // pred_region
      %s81 = sld [smem:[#allocation3]]
      %s82 = smul.f32 %s81, 0.083333336
      %83 = sst [smem:[%s76]] %s82
    $region21: #{tpu_custom_call.1} parent=1 // pred_fallthru
      _
    // Predicated region
    $region22: #{tpu_custom_call.1} parent=1 // pred_check
      _
    $region23: #{tpu_custom_call.1} parent=1 // pred_check_branch
      %85 = sbr.rel (0) target = $region25
    $region24: #{tpu_custom_call.1} parent=1 // pred_region
      %s87 = ssub.s32 16, 16
      %88 = vsyncadd [#allocation4], %s87
      %91 = dma.smem_to_hbm [#allocation3], 16, %s3, [#allocation4]
    $region25: #{tpu_custom_call.1} parent=1 // pred_fallthru
      _
    // Predicated region
    $region26: #{tpu_custom_call.1} parent=1 // pred_check
      _
    $region27: #{tpu_custom_call.1} parent=1 // pred_check_branch
      %93 = sbr.rel (0) target = $region29
    $region28: #{tpu_custom_call.1} parent=1 // pred_region
      %94 = dma.done [#allocation4], 16
    $region29: #{tpu_custom_call.1} parent=1 // pred_fallthru
      _
    %95 = sfence
    %96 = vsyncpa [#allocation4], 1

</llo_original>
